<compile_context>
chip_gen: v5e
topology: v5e:2x2
jax: 0.10.0
libtpu: 0.0.40
codegen_flags: <defaults>
</compile_context>

<pallas_src>
import jax
import jax.numpy as jnp
from jax.experimental import pallas as pl
from jax.experimental.pallas import tpu as pltpu


def _round_up(v, m):
    return ((v + m - 1) // m) * m


def _mlp_bn_kernel(x_ref, w1_ref, scale_ref, shift_ref, w2_ref, b2_ref, o_ref):
    """Fused Linear -> BatchNorm1d(eval, folded affine incl. b1) -> ReLU -> Linear."""
    # First linear layer: bf16 operands, f32 accumulation on the MXU.
    h = jnp.dot(x_ref[...], w1_ref[...], preferred_element_type=jnp.float32)

    # Eval-mode BatchNorm1d folded (with b1) into a per-feature affine, then
    # ReLU.  Kept in f32 on the VPU (v5e has no bf16 VPU path).
    h = jnp.maximum(h * scale_ref[...] + shift_ref[...], 0.0)

    # Second linear layer: cast activations to bf16 for the MXU, f32 accum.
    y = jnp.dot(h.astype(jnp.bfloat16), w2_ref[...],
                preferred_element_type=jnp.float32)

    o_ref[...] = (y + b2_ref[...]).astype(o_ref.dtype)


def network_forward(x, params):
    """JAX wrapper mirroring Network.forward: returns net_body(x)."""
    w1, b1, gamma, beta, run_mean, run_var, w2, b2 = (
        params["w1"], params["b1"], params["gamma"], params["beta"],
        params["running_mean"], params["running_var"], params["w2"], params["b2"])
    eps = 1e-5

    n, d_in = x.shape
    d_hid = w1.shape[1]
    d_out = w2.shape[1]

    # Fold eval-mode BN + first-layer bias into one per-feature affine:
    #   BN(x@w1 + b1) = (x@w1) * scale + shift
    inv_std = 1.0 / jnp.sqrt(run_var + eps)
    scale = gamma * inv_std
    shift = beta + (b1 - run_mean) * scale

    # Pad feature dims to lane-dense multiples of 128 and the batch to the
    # tile size (zero padding is exact for this network).
    d_in_p = _round_up(d_in, 128)
    d_hid_p = _round_up(d_hid, 128)
    d_out_p = _round_up(d_out, 128)
    tile_n = min(256, _round_up(n, 8))
    n_p = _round_up(n, tile_n)

    x_p = jnp.pad(x, ((0, n_p - n), (0, d_in_p - d_in))).astype(jnp.bfloat16)
    w1_p = jnp.pad(w1, ((0, d_in_p - d_in), (0, d_hid_p - d_hid))).astype(jnp.bfloat16)
    w2_p = jnp.pad(w2, ((0, d_hid_p - d_hid), (0, d_out_p - d_out))).astype(jnp.bfloat16)
    scale_p = jnp.pad(scale, (0, d_hid_p - d_hid)).reshape(1, -1).astype(jnp.float32)
    shift_p = jnp.pad(shift, (0, d_hid_p - d_hid)).reshape(1, -1).astype(jnp.float32)
    b2_p = jnp.pad(b2, (0, d_out_p - d_out)).reshape(1, -1).astype(jnp.float32)

    n_tiles = pl.cdiv(n_p, tile_n)

    cost = pl.CostEstimate(
        flops=2 * n_p * (d_in_p * d_hid_p + d_hid_p * d_out_p),
        transcendentals=0,
        bytes_accessed=(x_p.size * 2 + w1_p.size * 2 + w2_p.size * 2
                        + (scale_p.size + shift_p.size + b2_p.size) * 4
                        + n_p * d_out_p * 4),
    )

    y_p = pl.pallas_call(
        _mlp_bn_kernel,
        out_shape=jax.ShapeDtypeStruct((n_p, d_out_p), jnp.float32),
        grid=(n_tiles,),
        in_specs=[
            pl.BlockSpec((tile_n, d_in_p), lambda i: (i, 0)),     # x tile
            pl.BlockSpec((d_in_p, d_hid_p), lambda i: (0, 0)),    # w1 (resident)
            pl.BlockSpec((1, d_hid_p), lambda i: (0, 0)),         # BN scale
            pl.BlockSpec((1, d_hid_p), lambda i: (0, 0)),         # BN shift (+b1)
            pl.BlockSpec((d_hid_p, d_out_p), lambda i: (0, 0)),   # w2 (resident)
            pl.BlockSpec((1, d_out_p), lambda i: (0, 0)),         # b2
        ],
        out_specs=pl.BlockSpec((tile_n, d_out_p), lambda i: (i, 0)),
        compiler_params=pltpu.CompilerParams(
            dimension_semantics=("parallel",)),
        cost_estimate=cost,
    )(x_p, w1_p, scale_p, shift_p, w2_p, b2_p)

    return y_p[:n, :d_out]


def init_params(key, d_in, d_hid, d_out):
    """Deterministic synthetic parameters matching the net_body shapes."""
    k1, k2, k3, k4, k5 = jax.random.split(key, 5)
    return {
        "w1": jax.random.normal(k1, (d_in, d_hid), jnp.float32) * 0.1,
        "b1": jax.random.normal(k2, (d_hid,), jnp.float32) * 0.1,
        "gamma": jnp.ones((d_hid,), jnp.float32),
        "beta": jnp.zeros((d_hid,), jnp.float32),
        "running_mean": jax.random.normal(k3, (d_hid,), jnp.float32) * 0.05,
        "running_var": jnp.abs(jax.random.normal(k4, (d_hid,), jnp.float32)) + 1.0,
        "w2": jax.random.normal(k5, (d_hid, d_out), jnp.float32) * 0.1,
        "b2": jnp.zeros((d_out,), jnp.float32),
    }


def reference_forward(x, params):
    """Pure-JAX reference (same bf16-operand / f32-accumulate matmul policy)."""
    eps = 1e-5
    h = jnp.dot(x.astype(jnp.bfloat16), params["w1"].astype(jnp.bfloat16),
                preferred_element_type=jnp.float32) + params["b1"]
    h = (h - params["running_mean"]) / jnp.sqrt(params["running_var"] + eps)
    h = h * params["gamma"] + params["beta"]
    h = jnp.maximum(h, 0.0)
    return jnp.dot(h.astype(jnp.bfloat16), params["w2"].astype(jnp.bfloat16),
                   preferred_element_type=jnp.float32) + params["b2"]


if __name__ == "__main__":
    key = jax.random.PRNGKey(0)
    kx, kp = jax.random.split(key)

    N, D_IN, D_HID, D_OUT = 8, 32, 128, 32
    x = jax.random.normal(kx, (N, D_IN), jnp.float32)
    params = init_params(kp, D_IN, D_HID, D_OUT)

    y = network_forward(x, params)
    jax.block_until_ready(y)

    y_ref = reference_forward(x, params)
    assert y.shape == (N, D_OUT)
    assert jnp.allclose(y, y_ref, atol=5e-3, rtol=5e-3), "mismatch vs reference"

    print("KERNEL_OK")
</pallas_src>

<mosaic_0001>
module attributes {stable_mosaic.version = 11 : i64} {
  func.func @_mlp_bn_kernel(%arg0: i32, %arg1: memref<8x128xbf16, #tpu.memory_space<vmem>>, %arg2: memref<128x128xbf16, #tpu.memory_space<vmem>>, %arg3: memref<1x128xf32, #tpu.memory_space<vmem>>, %arg4: memref<1x128xf32, #tpu.memory_space<vmem>>, %arg5: memref<128x128xbf16, #tpu.memory_space<vmem>>, %arg6: memref<1x128xf32, #tpu.memory_space<vmem>>, %arg7: memref<8x128xf32, #tpu.memory_space<vmem>>) attributes {dimension_semantics = [#tpu.dimension_semantics<parallel>], iteration_bounds = array<i64: 1>, scalar_prefetch = 0 : i64, scratch_operands = 0 : i64, tpu.core_type = #tpu.core_type<tc>, window_params = [{transform_indices = @transform_0, window_bounds = array<i64: 8, 128>}, {pipeline_mode = #tpu.pipeline_mode<synchronous>, transform_indices = @transform_1, window_bounds = array<i64: 128, 128>}, {pipeline_mode = #tpu.pipeline_mode<synchronous>, transform_indices = @transform_2, window_bounds = array<i64: 1, 128>}, {pipeline_mode = #tpu.pipeline_mode<synchronous>, transform_indices = @transform_3, window_bounds = array<i64: 1, 128>}, {pipeline_mode = #tpu.pipeline_mode<synchronous>, transform_indices = @transform_4, window_bounds = array<i64: 128, 128>}, {pipeline_mode = #tpu.pipeline_mode<synchronous>, transform_indices = @transform_5, window_bounds = array<i64: 1, 128>}, {transform_indices = @transform_6, window_bounds = array<i64: 8, 128>}]} {
    %c0 = arith.constant 0 : index
    %c0_0 = arith.constant 0 : index
    %0 = vector.load %arg1[%c0, %c0_0] : memref<8x128xbf16, #tpu.memory_space<vmem>>, vector<8x128xbf16>
    %c0_1 = arith.constant 0 : index
    %c0_2 = arith.constant 0 : index
    %1 = vector.load %arg2[%c0_1, %c0_2] : memref<128x128xbf16, #tpu.memory_space<vmem>>, vector<128x128xbf16>
    %cst = arith.constant dense<0.000000e+00> : vector<8x128xf32>
    %2 = tpu.matmul %0, %1, %cst {dimension_numbers = #tpu.dot_dimension_numbers<[1], [0], [0], [1], [0, 0, 1, 1], [], []>} : vector<8x128xbf16>, vector<128x128xbf16>, vector<8x128xf32> -> vector<8x128xf32>
    %c0_3 = arith.constant 0 : index
    %c0_4 = arith.constant 0 : index
    %3 = vector.load %arg3[%c0_3, %c0_4] : memref<1x128xf32, #tpu.memory_space<vmem>>, vector<1x128xf32>
    %4 = vector.broadcast %3 : vector<1x128xf32> to vector<8x128xf32>
    %5 = arith.mulf %2, %4 : vector<8x128xf32>
    %c0_5 = arith.constant 0 : index
    %c0_6 = arith.constant 0 : index
    %6 = vector.load %arg4[%c0_5, %c0_6] : memref<1x128xf32, #tpu.memory_space<vmem>>, vector<1x128xf32>
    %7 = vector.broadcast %6 : vector<1x128xf32> to vector<8x128xf32>
    %8 = arith.addf %5, %7 : vector<8x128xf32>
    %cst_7 = arith.constant 0.000000e+00 : f32
    %9 = vector.broadcast %cst_7 : f32 to vector<8x128xf32>
    %10 = arith.maximumf %8, %9 : vector<8x128xf32>
    %11 = arith.truncf %10 : vector<8x128xf32> to vector<8x128xbf16>
    %c0_8 = arith.constant 0 : index
    %c0_9 = arith.constant 0 : index
    %12 = vector.load %arg5[%c0_8, %c0_9] : memref<128x128xbf16, #tpu.memory_space<vmem>>, vector<128x128xbf16>
    %cst_10 = arith.constant dense<0.000000e+00> : vector<8x128xf32>
    %13 = tpu.matmul %11, %12, %cst_10 {dimension_numbers = #tpu.dot_dimension_numbers<[1], [0], [0], [1], [0, 0, 1, 1], [], []>} : vector<8x128xbf16>, vector<128x128xbf16>, vector<8x128xf32> -> vector<8x128xf32>
    %c0_11 = arith.constant 0 : index
    %c0_12 = arith.constant 0 : index
    %14 = vector.load %arg6[%c0_11, %c0_12] : memref<1x128xf32, #tpu.memory_space<vmem>>, vector<1x128xf32>
    %15 = vector.broadcast %14 : vector<1x128xf32> to vector<8x128xf32>
    %16 = arith.addf %13, %15 : vector<8x128xf32>
    %c0_13 = arith.constant 0 : index
    %c0_14 = arith.constant 0 : index
    %17 = vector.load %arg7[%c0_13, %c0_14] : memref<8x128xf32, #tpu.memory_space<vmem>>, vector<8x128xf32>
    tpu.vector_store %arg7[%c0_13, %c0_14], %16 {strides = array<i32>} : memref<8x128xf32, #tpu.memory_space<vmem>>, vector<8x128xf32>,
    return
  }
  func.func @transform_0(%arg0: i32) -> (i32, i32) {
    %c0_i32 = arith.constant 0 : i32
    %c0_i32_0 = arith.constant 0 : i32
    return %arg0, %c0_i32 : i32, i32
  }
  func.func @transform_1(%arg0: i32) -> (i32, i32) {
    %c0_i32 = arith.constant 0 : i32
    %c0_i32_0 = arith.constant 0 : i32
    %c0_i32_1 = arith.constant 0 : i32
    return %c0_i32, %c0_i32_0 : i32, i32
  }
  func.func @transform_2(%arg0: i32) -> (i32, i32) {
    %c0_i32 = arith.constant 0 : i32
    %c0_i32_0 = arith.constant 0 : i32
    %c0_i32_1 = arith.constant 0 : i32
    return %c0_i32, %c0_i32_0 : i32, i32
  }
  func.func @transform_3(%arg0: i32) -> (i32, i32) {
    %c0_i32 = arith.constant 0 : i32
    %c0_i32_0 = arith.constant 0 : i32
    %c0_i32_1 = arith.constant 0 : i32
    return %c0_i32, %c0_i32_0 : i32, i32
  }
  func.func @transform_4(%arg0: i32) -> (i32, i32) {
    %c0_i32 = arith.constant 0 : i32
    %c0_i32_0 = arith.constant 0 : i32
    %c0_i32_1 = arith.constant 0 : i32
    return %c0_i32, %c0_i32_0 : i32, i32
  }
  func.func @transform_5(%arg0: i32) -> (i32, i32) {
    %c0_i32 = arith.constant 0 : i32
    %c0_i32_0 = arith.constant 0 : i32
    %c0_i32_1 = arith.constant 0 : i32
    return %c0_i32, %c0_i32_0 : i32, i32
  }
  func.func @transform_6(%arg0: i32) -> (i32, i32) {
    %c0_i32 = arith.constant 0 : i32
    %c0_i32_0 = arith.constant 0 : i32
    return %arg0, %c0_i32 : i32, i32
  }
}

</mosaic_0001>

<llo_original>
// kernel: tpu_custom_call.1
$region0: #{tpu_custom_call.1}
  #allocation0 [shape = 'u32[]', space=smem, size = 0x4, offset = 0x4, fixed_abs, tag = 'smem constant byte address 0x4 - core index']
  #allocation1 [shape = 'u32[72,128]{1,0:T(1,128)}', space=vmem, size = 0x9000, scoped, tag = 'internal scratch']
  %s0 = inlined_call_operand.hbm [shape: bf16[8,128], index: 0, kind: input, shape index: {}]
  %s1 = inlined_call_operand.hbm [shape: bf16[128,128], index: 1, kind: input, shape index: {}]
  %s2 = inlined_call_operand.vmem [shape: f32[1,128], index: 2, kind: input, shape index: {}]
  %s3 = inlined_call_operand.vmem [shape: f32[1,128], index: 3, kind: input, shape index: {}]
  %s4 = inlined_call_operand.hbm [shape: bf16[128,128], index: 4, kind: input, shape index: {}]
  %s5 = inlined_call_operand.vmem [shape: f32[1,128], index: 5, kind: input, shape index: {}]
  %s6 = inlined_call_operand.hbm [shape: f32[8,128], index: 6, kind: output, shape index: {}]
  %s7 = sld [smem:[#allocation0]]
  $region46: #{tpu_custom_call.1} parent=0
    _
  %s9 = ssub.s32 1, %s7
  %s10 = scalar_select 0, %s9, %s7
  $region1: #{tpu_custom_call.1} parent=0
    #allocation2 [shape = 'u8[2048]{0}', space=vmem, size = 0x800, scoped, tag = 'input window, operand 0, single buffered']
    #allocation3 [shape = 's32[1]{0}', space=sflag, size = 0x4, scoped, tag = 'scoped memory for tpu_custom_call.1']
    #allocation4 [shape = 's32[1]{0}', space=sflag, size = 0x4, scoped, tag = 'scoped memory for tpu_custom_call.1']
    #allocation5 [shape = 'u8[32768]{0}', space=vmem, size = 0x8000, scoped, tag = 'input window, operand 1, single buffered']
    #allocation6 [shape = 's32[1]{0}', space=sflag, size = 0x4, scoped, tag = 'scoped memory for tpu_custom_call.1']
    #allocation7 [shape = 'u8[32768]{0}', space=vmem, size = 0x8000, scoped, tag = 'input window, operand 4, single buffered']
    #allocation8 [shape = 'u8[4096]{0}', space=vmem, size = 0x1000, scoped, tag = 'output window, operand 0, single buffered']
    %11 = vsyncpa [#allocation3], 0
    %12 = vsyncpa [#allocation6], 0
    %13 = vsyncpa [#allocation4], 0
    // Predicated region
    $region2: #{tpu_custom_call.1} parent=1 // pred_check
      _
    $region3: #{tpu_custom_call.1} parent=1 // pred_check_branch
      %15 = sbr.rel (0) target = $region5
    $region4: #{tpu_custom_call.1} parent=1 // pred_region
      %17 = vsyncadd [#allocation3], 0
      %s19 = sshll.u32 %s0, 4
      %s20 = int_to_ptr.hbm [resolvable:$true] %s19
      %s21 = sshll.u32 [#allocation2], 4
      %s22 = int_to_ptr.vmem [resolvable:$true] %s21
      %24 = dma.hbm_to_vmem [thread:$0]  %s20, 64, %s22, [#allocation3]
    $region5: #{tpu_custom_call.1} parent=1 // pred_fallthru
      _
    // Predicated region
    $region6: #{tpu_custom_call.1} parent=1 // pred_check
      _
    $region7: #{tpu_custom_call.1} parent=1 // pred_check_branch
      %26 = sbr.rel (0) target = $region9
    $region8: #{tpu_custom_call.1} parent=1 // pred_region
      %28 = vsyncadd [#allocation6], 0
      %s29 = sshll.u32 %s1, 4
      %s30 = int_to_ptr.hbm [resolvable:$true] %s29
      %s31 = sshll.u32 [#allocation5], 4
      %s32 = int_to_ptr.vmem [resolvable:$true] %s31
      %37 = dma.hbm_to_vmem [thread:$0]  %s30, 1024, %s32, [#allocation6], 64, 64, 4
    $region9: #{tpu_custom_call.1} parent=1 // pred_fallthru
      _
    // Predicated region
    $region10: #{tpu_custom_call.1} parent=1 // pred_check
      _
    $region11: #{tpu_custom_call.1} parent=1 // pred_check_branch
      %39 = sbr.rel (0) target = $region13
    $region12: #{tpu_custom_call.1} parent=1 // pred_region
      _
    $region13: #{tpu_custom_call.1} parent=1 // pred_fallthru
      _
    // Predicated region
    $region14: #{tpu_custom_call.1} parent=1 // pred_check
      _
    $region15: #{tpu_custom_call.1} parent=1 // pred_check_branch
      %41 = sbr.rel (0) target = $region17
    $region16: #{tpu_custom_call.1} parent=1 // pred_region
      _
    $region17: #{tpu_custom_call.1} parent=1 // pred_fallthru
      _
    // Predicated region
    $region18: #{tpu_custom_call.1} parent=1 // pred_check
      _
    $region19: #{tpu_custom_call.1} parent=1 // pred_check_branch
      %43 = sbr.rel (0) target = $region21
    $region20: #{tpu_custom_call.1} parent=1 // pred_region
      %45 = vsyncadd [#allocation6], 0
      %s46 = sshll.u32 %s4, 4
      %s47 = int_to_ptr.hbm [resolvable:$true] %s46
      %s48 = sshll.u32 [#allocation7], 4
      %s49 = int_to_ptr.vmem [resolvable:$true] %s48
      %54 = dma.hbm_to_vmem [thread:$0]  %s47, 1024, %s49, [#allocation6], 64, 64, 4
    $region21: #{tpu_custom_call.1} parent=1 // pred_fallthru
      _
    // Predicated region
    $region22: #{tpu_custom_call.1} parent=1 // pred_check
      _
    $region23: #{tpu_custom_call.1} parent=1 // pred_check_branch
      %56 = sbr.rel (0) target = $region25
    $region24: #{tpu_custom_call.1} parent=1 // pred_region
      _
    $region25: #{tpu_custom_call.1} parent=1 // pred_fallthru
      _
    // Predicated region
    $region26: #{tpu_custom_call.1} parent=1 // pred_check
      _
    $region27: #{tpu_custom_call.1} parent=1 // pred_check_branch
      %58 = sbr.rel (0) target = $region29
    $region28: #{tpu_custom_call.1} parent=1 // pred_region
      %60 = dma.done [#allocation3], 64
    $region29: #{tpu_custom_call.1} parent=1 // pred_fallthru
      _
    // Predicated region
    $region30: #{tpu_custom_call.1} parent=1 // pred_check
      _
    $region31: #{tpu_custom_call.1} parent=1 // pred_check_branch
      %62 = sbr.rel (0) target = $region33
    $region32: #{tpu_custom_call.1} parent=1 // pred_region
      %64 = dma.done [#allocation6], 1024
    $region33: #{tpu_custom_call.1} parent=1 // pred_fallthru
      _
    // Predicated region
    $region34: #{tpu_custom_call.1} parent=1 // pred_check
      _
    $region35: #{tpu_custom_call.1} parent=1 // pred_check_branch
      %66 = sbr.rel (0) target = $region37
    $region36: #{tpu_custom_call.1} parent=1 // pred_region
      %68 = dma.done [#allocation6], 1024
    $region37: #{tpu_custom_call.1} parent=1 // pred_fallthru
      _
    %v69 = vld [vmem:[#allocation2] sm:$0xf]
    %v70 = vld [vmem:[#allocation5] sm:$0xf]
    %v71 = vld [vmem:[#allocation5 + $0x4] sm:$0xf]
    %v72 = vld [vmem:[#allocation5 + $0x8] sm:$0xf]
    %v73 = vld [vmem:[#allocation5 + $0xc] sm:$0xf]
    %v74 = vld [vmem:[#allocation5 + $0x10] sm:$0xf]
    %v75 = vld [vmem:[#allocation5 + $0x14] sm:$0xf]
    %v76 = vld [vmem:[#allocation5 + $0x18] sm:$0xf]
    %v77 = vld [vmem:[#allocation5 + $0x1c] sm:$0xf]
    %v78 = vld [vmem:[#allocation5 + $0x20] sm:$0xf]
    %v79 = vld [vmem:[#allocation5 + $0x24] sm:$0xf]
    %v80 = vld [vmem:[#allocation5 + $0x28] sm:$0xf]
    %v81 = vld [vmem:[#allocation5 + $0x2c] sm:$0xf]
    %v82 = vld [vmem:[#allocation5 + $0x30] sm:$0xf]
    %v83 = vld [vmem:[#allocation5 + $0x34] sm:$0xf]
    %v84 = vld [vmem:[#allocation5 + $0x38] sm:$0xf]
    %v85 = vld [vmem:[#allocation5 + $0x3c] sm:$0xf]
    %v102 = vunpack.c.l.b16 %v70
    %v103 = vunpack.c.l.b16 %v71
    %v104 = vunpack.c.l.b16 %v72
    %v105 = vunpack.c.l.b16 %v73
    %v106 = vunpack.c.l.b16 %v74
    %v107 = vunpack.c.l.b16 %v75
    %v108 = vunpack.c.l.b16 %v76
    %v109 = vunpack.c.l.b16 %v77
    %v110 = vunpack.c.l.b16 %v78
    %v111 = vunpack.c.l.b16 %v79
    %v112 = vunpack.c.l.b16 %v80
    %v113 = vunpack.c.l.b16 %v81
    %v114 = vunpack.c.l.b16 %v82
    %v115 = vunpack.c.l.b16 %v83
    %v116 = vunpack.c.l.b16 %v84
    %v117 = vunpack.c.l.b16 %v85
    %v118 = vpack.c.b16 %v103, %v102
    %v119 = vpack.c.b16 %v105, %v104
    %v120 = vpack.c.b16 %v107, %v106
    %v121 = vpack.c.b16 %v109, %v108
    %v122 = vpack.c.b16 %v111, %v110
    %v123 = vpack.c.b16 %v113, %v112
    %v124 = vpack.c.b16 %v115, %v114
    %v125 = vpack.c.b16 %v117, %v116
    %134 = vmatpush.bf16.msra.mxu0 %v125
    %135 = vmatpush.bf16.msra.mxu0 %v124
    %136 = vmatpush.bf16.msra.mxu0 %v123
    %137 = vmatpush.bf16.msra.mxu0 %v122
    %138 = vmatpush.bf16.msra.mxu0 %v121
    %139 = vmatpush.bf16.msra.mxu0 %v120
    %140 = vmatpush.bf16.msra.mxu0 %v119
    %141 = vmatpush.bf16.msra.mxu0 %v118
    %142 = vmatmul.bf16.gmra.mxu0 %v69
    %v143 = vpop.f32.mrf.mxu0
    %v144 = vadd.f32 0.0, %v143
    %v145 = vpop.f32.mrf.mxu0
    %146 = vdwg.mxu0
    %v147 = vld [vmem:[%s2] sm:$0x1]
    %v149 = vperm.slane %v147, 0
    %v151 = vmul.f32 %v144, %v149
    %v152 = vld [vmem:[%s3] sm:$0x1]
    %v154 = vperm.slane %v152, 0
    %v156 = vadd.f32 %v151, %v154
    %v157 = vmax.f32 %v156, 0.0
    %v158 = vpack.c.bf16 %v157, %v157
    %v159 = vld [vmem:[#allocation7] sm:$0xf]
    %v160 = vld [vmem:[#allocation7 + $0x4] sm:$0xf]
    %v161 = vld [vmem:[#allocation7 + $0x8] sm:$0xf]
    %v162 = vld [vmem:[#allocation7 + $0xc] sm:$0xf]
    %v163 = vld [vmem:[#allocation7 + $0x10] sm:$0xf]
    %v164 = vld [vmem:[#allocation7 + $0x14] sm:$0xf]
    %v165 = vld [vmem:[#allocation7 + $0x18] sm:$0xf]
    %v166 = vld [vmem:[#allocation7 + $0x1c] sm:$0xf]
    %v167 = vld [vmem:[#allocation7 + $0x20] sm:$0xf]
    %v168 = vld [vmem:[#allocation7 + $0x24] sm:$0xf]
    %v169 = vld [vmem:[#allocation7 + $0x28] sm:$0xf]
    %v170 = vld [vmem:[#allocation7 + $0x2c] sm:$0xf]
    %v171 = vld [vmem:[#allocation7 + $0x30] sm:$0xf]
    %v172 = vld [vmem:[#allocation7 + $0x34] sm:$0xf]
    %v173 = vld [vmem:[#allocation7 + $0x38] sm:$0xf]
    %v174 = vld [vmem:[#allocation7 + $0x3c] sm:$0xf]
    %v175 = vld [vmem:[%s5] sm:$0x1]
    %v177 = vperm.slane %v175, 0
    %v195 = vunpack.c.l.b16 %v159
    %v196 = vunpack.c.l.b16 %v160
    %v197 = vunpack.c.l.b16 %v161
    %v198 = vunpack.c.l.b16 %v162
    %v199 = vunpack.c.l.b16 %v163
    %v200 = vunpack.c.l.b16 %v164
    %v201 = vunpack.c.l.b16 %v165
    %v202 = vunpack.c.l.b16 %v166
    %v203 = vunpack.c.l.b16 %v167
    %v204 = vunpack.c.l.b16 %v168
    %v205 = vunpack.c.l.b16 %v169
    %v206 = vunpack.c.l.b16 %v170
    %v207 = vunpack.c.l.b16 %v171
    %v208 = vunpack.c.l.b16 %v172
    %v209 = vunpack.c.l.b16 %v173
    %v210 = vunpack.c.l.b16 %v174
    %v211 = vpack.c.b16 %v196, %v195
    %v212 = vpack.c.b16 %v198, %v197
    %v213 = vpack.c.b16 %v200, %v199
    %v214 = vpack.c.b16 %v202, %v201
    %v215 = vpack.c.b16 %v204, %v203
    %v216 = vpack.c.b16 %v206, %v205
    %v217 = vpack.c.b16 %v208, %v207
    %v218 = vpack.c.b16 %v210, %v209
    %227 = vmatpush.bf16.msra.mxu0 %v218
    %228 = vmatpush.bf16.msra.mxu0 %v217
    %229 = vmatpush.bf16.msra.mxu0 %v216
    %230 = vmatpush.bf16.msra.mxu0 %v215
    %231 = vmatpush.bf16.msra.mxu0 %v214
    %232 = vmatpush.bf16.msra.mxu0 %v213
    %233 = vmatpush.bf16.msra.mxu0 %v212
    %234 = vmatpush.bf16.msra.mxu0 %v211
    %235 = vmatmul.bf16.gmra.mxu0 %v158
    %v236 = vpop.f32.mrf.mxu0
    %v237 = vadd.f32 %v177, %v236
    %v238 = vpop.f32.mrf.mxu0
    %239 = vdwg.mxu0
    %240 = vst [vmem:[#allocation8] sm:$0xff] %v237
    // Predicated region
    $region38: #{tpu_custom_call.1} parent=1 // pred_check
      _
    $region39: #{tpu_custom_call.1} parent=1 // pred_check_branch
      %242 = sbr.rel (0) target = $region41
    $region40: #{tpu_custom_call.1} parent=1 // pred_region
      %244 = vsyncadd [#allocation4], 0
      %s246 = sshll.u32 [#allocation8], 4
      %s247 = int_to_ptr.vmem [resolvable:$true] %s246
      %s248 = sshll.u32 %s6, 4
      %s249 = int_to_ptr.hbm [resolvable:$true] %s248
      %251 = dma.vmem_to_hbm [thread:$0]  %s247, 128, %s249, [#allocation4]
    $region41: #{tpu_custom_call.1} parent=1 // pred_fallthru
      _
    // Predicated region
    $region42: #{tpu_custom_call.1} parent=1 // pred_check
      _
    $region43: #{tpu_custom_call.1} parent=1 // pred_check_branch
      %253 = sbr.rel (0) target = $region45
    $region44: #{tpu_custom_call.1} parent=1 // pred_region
      %255 = dma.done [#allocation4], 128
    $region45: #{tpu_custom_call.1} parent=1 // pred_fallthru
      _
    %256 = vsyncpa [#allocation3], 1
    %257 = vsyncpa [#allocation6], 1
    %258 = vsyncpa [#allocation4], 1

</llo_original>
